<compile_context>
chip_gen: v6e
topology: v6e:2x2x1
jax: 0.10.0
libtpu: 0.0.40
codegen_flags: <defaults>
</compile_context>

<pallas_src>
import functools

import jax
import jax.numpy as jnp
from jax.experimental import pallas as pl
from jax.experimental.pallas import tpu as pltpu


# ----------------------------------------------------------------------------
# Glue: build (H, Hp) / transposed (Wp, W) resize+place matrices per target
# ----------------------------------------------------------------------------
def _interp_place_matrix(out_size, src_size, s, off):
    """A[o, k] = bilinear weight of patch row k for canvas row o
    (align_corners=True), zero outside the placed window [off, off + s)."""
    o = jnp.arange(out_size, dtype=jnp.int32)
    j = o - off
    valid = (j >= 0) & (j < s)
    jf = j.astype(jnp.float32)
    sf = s.astype(jnp.float32)
    # align_corners=True: src = j * (src_size - 1) / (s - 1); s == 1 -> src = 0
    scale = jnp.where(s > 1, (src_size - 1) / jnp.maximum(sf - 1.0, 1.0), 0.0)
    src = jnp.clip(jf * scale, 0.0, float(src_size - 1))
    f = jnp.floor(src)
    w = src - f
    fi = f.astype(jnp.int32)
    fi1 = jnp.minimum(fi + 1, src_size - 1)
    A = (jax.nn.one_hot(fi, src_size, dtype=jnp.float32) * (1.0 - w)[:, None]
         + jax.nn.one_hot(fi1, src_size, dtype=jnp.float32) * w[:, None])
    return A * valid[:, None].astype(jnp.float32)


def _build_target_mats(targets, H, W, Hp, Wp):
    """targets: (N, 6) float32 rows [img_idx, class, x, y, w, h].
    Returns ay: (N, H, Hp) and axt (pre-transposed A_x): (N, Wp, W)."""
    def per_target(t):
        # int() truncation on non-negative values == astype(int32)
        s = (t[-1] * H).astype(jnp.int32)                       # patch_size
        x_center = (t[2] * W).astype(jnp.int32)
        y_center = (t[3] * H).astype(jnp.int32)
        pad_left = x_center - (0.5 * s.astype(jnp.float32)).astype(jnp.int32)
        pad_top = y_center - (0.6 * s.astype(jnp.float32)).astype(jnp.int32)
        ay = _interp_place_matrix(H, Hp, s, pad_top)            # (H, Hp)
        ax = _interp_place_matrix(W, Wp, s, pad_left)           # (W, Wp)
        return ay, ax.T                                         # (H,Hp), (Wp,W)
    return jax.vmap(per_target)(targets)


# ----------------------------------------------------------------------------
# Pallas kernel: one grid step per (sorted) target; output block follows img_idx
# ----------------------------------------------------------------------------
def _patch_kernel(idx_ref, ay_ref, axt_ref, patch_ref, out_ref, mask_ref,
                  *, C, Hp):
    i = pl.program_id(0)
    n = pl.num_programs(0)

    cur = idx_ref[i]
    prev = idx_ref[jnp.maximum(i - 1, 0)]
    nxt = idx_ref[jnp.minimum(i + 1, n - 1)]
    is_first = (i == 0) | (prev != cur)          # first target of this image run
    is_last = (i == n - 1) | (nxt != cur)        # last target of this image run

    @pl.when(is_first)
    def _init():
        out_ref[...] = jnp.zeros_like(out_ref)
        mask_ref[...] = jnp.zeros_like(mask_ref)

    ay = ay_ref[0]                               # (H, Hp)
    axt = axt_ref[0]                             # (Wp, W)

    # Rank-1 mask: bilinear resize of a ones image placed in the window is
    # exactly rowsum(ay) (x) rowsum(ax) -- no MXU work needed.
    ry = jnp.sum(ay, axis=1, keepdims=True)      # (H, 1)   lane-reduce (XLU)
    rx = jnp.sum(axt, axis=0, keepdims=True)     # (1, W)   sublane-reduce
    mask_ref[0, 0] += ry * rx                    # (H, W)

    # Channel-fused A_x contraction: one wide MXU call.
    # patch_ref is (C*Hp, Wp), axt is (Wp, W) -> tmp is (C*Hp, W).
    tmp = jnp.dot(patch_ref[...], axt, preferred_element_type=jnp.float32)
    # Then apply A_y per channel (K = Hp, N = W lane-dense).
    for c in range(C):
        out_ref[0, c] += jnp.dot(ay, tmp[c * Hp:(c + 1) * Hp, :],
                                 preferred_element_type=jnp.float32)

    @pl.when(is_last)
    def _finalize():
        out_ref[...] = jnp.clip(out_ref[...], 0.0, 1.0)


def patch_transformer(patch, targets, imgs):
    """patch: (C, Hp, Wp) f32; targets: (N, 6) f32; imgs: (B, C, H, W) (shape only).

    Returns (patch_tmp, patch_mask_tmp), both (B, C, H, W) f32 like the PyTorch
    module."""
    B, C, H, W = imgs.shape
    Cp, Hp, Wp = patch.shape
    assert Cp == C
    N = targets.shape[0]

    # Append one zero-sized dummy target per image so every image's canvas is
    # visited (and therefore zero-initialized / clamped) by the kernel; the
    # dummy's resize matrices are identically zero, so it contributes nothing.
    dummy = jnp.zeros((B, 6), jnp.float32).at[:, 0].set(
        jnp.arange(B, dtype=jnp.float32))
    targets_all = jnp.concatenate([targets, dummy], axis=0)     # (N+B, 6)
    NT = N + B

    img_idx = targets_all[:, 0].astype(jnp.int32)               # (N+B,)
    ay, axt = _build_target_mats(targets_all, H, W, Hp, Wp)     # (NT,H,Hp),(NT,Wp,W)

    # Group targets by image: sorted img_idx drives the data-dependent output
    # block index so each image's canvas stays VMEM-resident for its whole run.
    order = jnp.argsort(img_idx)
    idx_sorted = img_idx[order]
    ay_sorted = ay[order]
    axt_sorted = axt[order]

    patch_flat = patch.reshape(C * Hp, Wp)                      # grid-invariant

    kernel = functools.partial(_patch_kernel, C=C, Hp=Hp)

    grid_spec = pltpu.PrefetchScalarGridSpec(
        num_scalar_prefetch=1,                                  # sorted img_idx
        grid=(NT,),
        in_specs=[
            pl.BlockSpec((1, H, Hp), lambda i, idx: (i, 0, 0)),       # A_y[i]
            pl.BlockSpec((1, Wp, W), lambda i, idx: (i, 0, 0)),       # A_x[i]^T
            pl.BlockSpec((C * Hp, Wp), lambda i, idx: (0, 0)),        # patch (invariant)
        ],
        out_specs=[
            pl.BlockSpec((1, C, H, W), lambda i, idx: (idx[i], 0, 0, 0)),
            pl.BlockSpec((1, 1, H, W), lambda i, idx: (idx[i], 0, 0, 0)),
        ],
    )

    out_shapes = (jax.ShapeDtypeStruct((B, C, H, W), jnp.float32),
                  jax.ShapeDtypeStruct((B, 1, H, W), jnp.float32))

    # Explicit VMEM budget: resident canvases + double-buffered tiles, headroom,
    # clamped to a value safe on v5e (16 MiB default scope) and v7x (64 MiB phys).
    est_bytes = 4 * (2 * (C * H * W + H * W)      # out + mask canvases (dbl-buf)
                     + 2 * (H * Hp + Wp * W)       # A_y / A_x^T tiles (dbl-buf)
                     + 2 * C * Hp * Wp             # patch
                     + 2 * C * Hp * W)             # tmp intermediate
    vmem_limit = int(min(max(2 * est_bytes, 32 * 1024 * 1024), 48 * 1024 * 1024))

    out, mask = pl.pallas_call(
        kernel,
        out_shape=out_shapes,
        grid_spec=grid_spec,
        compiler_params=pltpu.CompilerParams(
            dimension_semantics=("arbitrary",),   # data-dependent output index
            vmem_limit_bytes=vmem_limit),
    )(idx_sorted, ay_sorted, axt_sorted, patch_flat)

    # Restore the PyTorch-matching channel-replicated mask shape.
    mask = jnp.broadcast_to(mask, (B, C, H, W))
    return out, mask


# ----------------------------------------------------------------------------
# Pure-JAX reference (same math, no Pallas) for a correctness sanity check
# ----------------------------------------------------------------------------
def _reference(patch, targets, imgs):
    B, C, H, W = imgs.shape
    _, Hp, Wp = patch.shape
    img_idx = targets[:, 0].astype(jnp.int32)
    ay, axt = _build_target_mats(targets, H, W, Hp, Wp)
    out = jnp.zeros((B, C, H, W), jnp.float32)
    mask = jnp.zeros((B, C, H, W), jnp.float32)
    ones_p = jnp.ones((Hp, Wp), jnp.float32)
    for i in range(targets.shape[0]):
        placed = jnp.einsum('hP,cPQ,Qw->chw', ay[i], patch, axt[i])
        m = jnp.einsum('hP,PQ,Qw->hw', ay[i], ones_p, axt[i])
        out = out.at[img_idx[i]].add(placed)
        mask = mask.at[img_idx[i]].add(jnp.broadcast_to(m, (C, H, W)))
    return jnp.clip(out, 0.0, 1.0), mask


if __name__ == "__main__":
    key = jax.random.PRNGKey(0)
    B, C, H, W = 2, 3, 16, 16
    Hp, Wp = 8, 8

    kp, ki = jax.random.split(key)
    patch = jax.random.uniform(kp, (C, Hp, Wp), dtype=jnp.float32)
    imgs = jax.random.uniform(ki, (B, C, H, W), dtype=jnp.float32)

    # targets rows: [img_idx, class, x_frac, y_frac, w_frac, h_frac]
    targets = jnp.array([
        [0.0, 0.0, 0.50, 0.50, 0.30, 0.375],
        [1.0, 0.0, 0.25, 0.30, 0.20, 0.500],
        [0.0, 0.0, 0.70, 0.60, 0.20, 0.250],
        [1.0, 0.0, 0.60, 0.70, 0.30, 0.375],
    ], dtype=jnp.float32)

    patch_tmp, patch_mask_tmp = patch_transformer(patch, targets, imgs)
    patch_tmp = jax.block_until_ready(patch_tmp)
    patch_mask_tmp = jax.block_until_ready(patch_mask_tmp)

    ref_tmp, ref_mask = _reference(patch, targets, imgs)
    assert jnp.allclose(patch_tmp, ref_tmp, atol=1e-5), "patch_tmp mismatch"
    assert jnp.allclose(patch_mask_tmp, ref_mask, atol=1e-5), "patch_mask_tmp mismatch"

    print("KERNEL_OK")
</pallas_src>

<mosaic_0001>
module attributes {stable_mosaic.version = 11 : i64} {
  func.func @_patch_kernel(%arg0: i32, %arg1: memref<6xi32, #tpu.memory_space<smem>>, %arg2: memref<1x16x8xf32, #tpu.memory_space<vmem>>, %arg3: memref<1x8x16xf32, #tpu.memory_space<vmem>>, %arg4: memref<24x8xf32, #tpu.memory_space<vmem>>, %arg5: memref<1x3x16x16xf32, #tpu.memory_space<vmem>>, %arg6: memref<1x1x16x16xf32, #tpu.memory_space<vmem>>) attributes {dimension_semantics = [#tpu.dimension_semantics<arbitrary>], iteration_bounds = array<i64: 6>, scalar_prefetch = 1 : i64, scratch_operands = 0 : i64, tpu.core_type = #tpu.core_type<tc>, window_params = [{transform_indices = @transform_0, window_bounds = array<i64: 1, 16, 8>}, {transform_indices = @transform_1, window_bounds = array<i64: 1, 8, 16>}, {pipeline_mode = #tpu.pipeline_mode<synchronous>, transform_indices = @transform_2, window_bounds = array<i64: 24, 8>}, {transform_indices = @transform_3, window_bounds = array<i64: 1, 3, 16, 16>}, {transform_indices = @transform_4, window_bounds = array<i64: 1, 1, 16, 16>}]} {
    %0 = arith.index_cast %arg0 : i32 to index
    %1 = memref.load %arg1[%0] : memref<6xi32, #tpu.memory_space<smem>>
    %c1_i32 = arith.constant 1 : i32
    %2 = arith.subi %arg0, %c1_i32 : i32
    %c0_i32 = arith.constant 0 : i32
    %3 = arith.maxsi %2, %c0_i32 : i32
    %4 = arith.index_cast %3 : i32 to index
    %5 = memref.load %arg1[%4] : memref<6xi32, #tpu.memory_space<smem>>
    %c1_i32_0 = arith.constant 1 : i32
    %6 = arith.addi %arg0, %c1_i32_0 : i32
    %c5_i32 = arith.constant 5 : i32
    %7 = arith.minsi %6, %c5_i32 : i32
    %8 = arith.index_cast %7 : i32 to index
    %9 = memref.load %arg1[%8] : memref<6xi32, #tpu.memory_space<smem>>
    %c0_i32_1 = arith.constant 0 : i32
    %10 = arith.cmpi eq, %arg0, %c0_i32_1 : i32
    %11 = arith.cmpi ne, %5, %1 : i32
    %12 = arith.ori %10, %11 : i1
    %c5_i32_2 = arith.constant 5 : i32
    %13 = arith.cmpi eq, %arg0, %c5_i32_2 : i32
    %14 = arith.cmpi ne, %9, %1 : i32
    %15 = arith.ori %13, %14 : i1
    %16 = arith.extui %12 : i1 to i32
    %c0_i32_3 = arith.constant 0 : i32
    %17 = arith.cmpi ne, %16, %c0_i32_3 : i32
    scf.if %17 {
      %cst_47 = arith.constant 0.000000e+00 : f32
      %63 = vector.broadcast %cst_47 : f32 to vector<1x3x16x16xf32>
      %c0_48 = arith.constant 0 : index
      %c0_49 = arith.constant 0 : index
      %c0_50 = arith.constant 0 : index
      %c0_51 = arith.constant 0 : index
      %64 = vector.load %arg5[%c0_48, %c0_49, %c0_50, %c0_51] : memref<1x3x16x16xf32, #tpu.memory_space<vmem>>, vector<1x3x16x16xf32>
      tpu.vector_store %arg5[%c0_48, %c0_49, %c0_50, %c0_51], %63 {strides = array<i32>} : memref<1x3x16x16xf32, #tpu.memory_space<vmem>>, vector<1x3x16x16xf32>,
      %cst_52 = arith.constant 0.000000e+00 : f32
      %65 = vector.broadcast %cst_52 : f32 to vector<1x1x16x16xf32>
      %c0_53 = arith.constant 0 : index
      %c0_54 = arith.constant 0 : index
      %c0_55 = arith.constant 0 : index
      %c0_56 = arith.constant 0 : index
      %66 = vector.load %arg6[%c0_53, %c0_54, %c0_55, %c0_56] : memref<1x1x16x16xf32, #tpu.memory_space<vmem>>, vector<1x1x16x16xf32>
      tpu.vector_store %arg6[%c0_53, %c0_54, %c0_55, %c0_56], %65 {strides = array<i32>} : memref<1x1x16x16xf32, #tpu.memory_space<vmem>>, vector<1x1x16x16xf32>,
    } else {
    }
    %c0 = arith.constant 0 : index
    %c0_4 = arith.constant 0 : index
    %c0_5 = arith.constant 0 : index
    %18 = vector.load %arg2[%c0, %c0_4, %c0_5] : memref<1x16x8xf32, #tpu.memory_space<vmem>>, vector<1x16x8xf32>
    %19 = vector.shape_cast %18 : vector<1x16x8xf32> to vector<16x8xf32>
    %c0_6 = arith.constant 0 : index
    %c0_7 = arith.constant 0 : index
    %c0_8 = arith.constant 0 : index
    %20 = vector.load %arg3[%c0_6, %c0_7, %c0_8] : memref<1x8x16xf32, #tpu.memory_space<vmem>>, vector<1x8x16xf32>
    %21 = vector.shape_cast %20 : vector<1x8x16xf32> to vector<8x16xf32>
    %cst = arith.constant dense<0.000000e+00> : vector<16xf32>
    %22 = vector.multi_reduction <add>, %19, %cst [1] : vector<16x8xf32> to vector<16xf32>
    %23 = vector.shape_cast %22 : vector<16xf32> to vector<16x1xf32>
    %cst_9 = arith.constant dense<0.000000e+00> : vector<16xf32>
    %24 = vector.multi_reduction <add>, %21, %cst_9 [0] : vector<8x16xf32> to vector<16xf32>
    %25 = vector.shape_cast %24 : vector<16xf32> to vector<1x16xf32>
    %c0_10 = arith.constant 0 : index
    %c0_11 = arith.constant 0 : index
    %c0_12 = arith.constant 0 : index
    %c0_13 = arith.constant 0 : index
    %26 = vector.load %arg6[%c0_10, %c0_11, %c0_12, %c0_13] : memref<1x1x16x16xf32, #tpu.memory_space<vmem>>, vector<1x1x16x16xf32>
    %27 = vector.shape_cast %26 : vector<1x1x16x16xf32> to vector<16x16xf32>
    %28 = vector.broadcast %23 : vector<16x1xf32> to vector<16x16xf32>
    %29 = vector.broadcast %25 : vector<1x16xf32> to vector<16x16xf32>
    %30 = arith.mulf %28, %29 : vector<16x16xf32>
    %31 = arith.addf %27, %30 : vector<16x16xf32>
    %c0_14 = arith.constant 0 : index
    %c0_15 = arith.constant 0 : index
    %c0_16 = arith.constant 0 : index
    %c0_17 = arith.constant 0 : index
    %32 = vector.load %arg6[%c0_14, %c0_15, %c0_16, %c0_17] : memref<1x1x16x16xf32, #tpu.memory_space<vmem>>, vector<1x1x16x16xf32>
    %33 = vector.shape_cast %32 : vector<1x1x16x16xf32> to vector<16x16xf32>
    %34 = vector.shape_cast %31 : vector<16x16xf32> to vector<1x1x16x16xf32>
    tpu.vector_store %arg6[%c0_14, %c0_15, %c0_16, %c0_17], %34 {strides = array<i32>} : memref<1x1x16x16xf32, #tpu.memory_space<vmem>>, vector<1x1x16x16xf32>,
    %c0_18 = arith.constant 0 : index
    %c0_19 = arith.constant 0 : index
    %35 = vector.load %arg4[%c0_18, %c0_19] : memref<24x8xf32, #tpu.memory_space<vmem>>, vector<24x8xf32>
    %cst_20 = arith.constant dense<0.000000e+00> : vector<24x16xf32>
    %36 = tpu.matmul %35, %21, %cst_20 {dimension_numbers = #tpu.dot_dimension_numbers<[1], [0], [0], [1], [0, 0, 1, 1], [], []>} : vector<24x8xf32>, vector<8x16xf32>, vector<24x16xf32> -> vector<24x16xf32>
    %c0_21 = arith.constant 0 : index
    %c0_22 = arith.constant 0 : index
    %c0_23 = arith.constant 0 : index
    %c0_24 = arith.constant 0 : index
    %37 = vector.load %arg5[%c0_21, %c0_22, %c0_23, %c0_24] : memref<1x3x16x16xf32, #tpu.memory_space<vmem>>, vector<1x1x16x16xf32>
    %38 = vector.shape_cast %37 : vector<1x1x16x16xf32> to vector<16x16xf32>
    %39 = vector.extract_strided_slice %36 {offsets = [0, 0], sizes = [8, 16], strides = [1, 1]} : vector<24x16xf32> to vector<8x16xf32>
    %cst_25 = arith.constant dense<0.000000e+00> : vector<16x16xf32>
    %40 = tpu.matmul %19, %39, %cst_25 {dimension_numbers = #tpu.dot_dimension_numbers<[1], [0], [0], [1], [0, 0, 1, 1], [], []>} : vector<16x8xf32>, vector<8x16xf32>, vector<16x16xf32> -> vector<16x16xf32>
    %41 = arith.addf %38, %40 : vector<16x16xf32>
    %c0_26 = arith.constant 0 : index
    %c0_27 = arith.constant 0 : index
    %c0_28 = arith.constant 0 : index
    %c0_29 = arith.constant 0 : index
    %42 = vector.load %arg5[%c0_26, %c0_27, %c0_28, %c0_29] : memref<1x3x16x16xf32, #tpu.memory_space<vmem>>, vector<1x1x16x16xf32>
    %43 = vector.shape_cast %42 : vector<1x1x16x16xf32> to vector<16x16xf32>
    %44 = vector.shape_cast %41 : vector<16x16xf32> to vector<1x1x16x16xf32>
    tpu.vector_store %arg5[%c0_26, %c0_27, %c0_28, %c0_29], %44 {strides = array<i32>} : memref<1x3x16x16xf32, #tpu.memory_space<vmem>>, vector<1x1x16x16xf32>,
    %c0_30 = arith.constant 0 : index
    %c1 = arith.constant 1 : index
    %c0_31 = arith.constant 0 : index
    %c0_32 = arith.constant 0 : index
    %45 = vector.load %arg5[%c0_30, %c1, %c0_31, %c0_32] : memref<1x3x16x16xf32, #tpu.memory_space<vmem>>, vector<1x1x16x16xf32>
    %46 = vector.shape_cast %45 : vector<1x1x16x16xf32> to vector<16x16xf32>
    %47 = vector.extract_strided_slice %36 {offsets = [8, 0], sizes = [8, 16], strides = [1, 1]} : vector<24x16xf32> to vector<8x16xf32>
    %cst_33 = arith.constant dense<0.000000e+00> : vector<16x16xf32>
    %48 = tpu.matmul %19, %47, %cst_33 {dimension_numbers = #tpu.dot_dimension_numbers<[1], [0], [0], [1], [0, 0, 1, 1], [], []>} : vector<16x8xf32>, vector<8x16xf32>, vector<16x16xf32> -> vector<16x16xf32>
    %49 = arith.addf %46, %48 : vector<16x16xf32>
    %c0_34 = arith.constant 0 : index
    %c1_35 = arith.constant 1 : index
    %c0_36 = arith.constant 0 : index
    %c0_37 = arith.constant 0 : index
    %50 = vector.load %arg5[%c0_34, %c1_35, %c0_36, %c0_37] : memref<1x3x16x16xf32, #tpu.memory_space<vmem>>, vector<1x1x16x16xf32>
    %51 = vector.shape_cast %50 : vector<1x1x16x16xf32> to vector<16x16xf32>
    %52 = vector.shape_cast %49 : vector<16x16xf32> to vector<1x1x16x16xf32>
    tpu.vector_store %arg5[%c0_34, %c1_35, %c0_36, %c0_37], %52 {strides = array<i32>} : memref<1x3x16x16xf32, #tpu.memory_space<vmem>>, vector<1x1x16x16xf32>,
    %c0_38 = arith.constant 0 : index
    %c2 = arith.constant 2 : index
    %c0_39 = arith.constant 0 : index
    %c0_40 = arith.constant 0 : index
    %53 = vector.load %arg5[%c0_38, %c2, %c0_39, %c0_40] : memref<1x3x16x16xf32, #tpu.memory_space<vmem>>, vector<1x1x16x16xf32>
    %54 = vector.shape_cast %53 : vector<1x1x16x16xf32> to vector<16x16xf32>
    %55 = vector.extract_strided_slice %36 {offsets = [16, 0], sizes = [8, 16], strides = [1, 1]} : vector<24x16xf32> to vector<8x16xf32>
    %cst_41 = arith.constant dense<0.000000e+00> : vector<16x16xf32>
    %56 = tpu.matmul %19, %55, %cst_41 {dimension_numbers = #tpu.dot_dimension_numbers<[1], [0], [0], [1], [0, 0, 1, 1], [], []>} : vector<16x8xf32>, vector<8x16xf32>, vector<16x16xf32> -> vector<16x16xf32>
    %57 = arith.addf %54, %56 : vector<16x16xf32>
    %c0_42 = arith.constant 0 : index
    %c2_43 = arith.constant 2 : index
    %c0_44 = arith.constant 0 : index
    %c0_45 = arith.constant 0 : index
    %58 = vector.load %arg5[%c0_42, %c2_43, %c0_44, %c0_45] : memref<1x3x16x16xf32, #tpu.memory_space<vmem>>, vector<1x1x16x16xf32>
    %59 = vector.shape_cast %58 : vector<1x1x16x16xf32> to vector<16x16xf32>
    %60 = vector.shape_cast %57 : vector<16x16xf32> to vector<1x1x16x16xf32>
    tpu.vector_store %arg5[%c0_42, %c2_43, %c0_44, %c0_45], %60 {strides = array<i32>} : memref<1x3x16x16xf32, #tpu.memory_space<vmem>>, vector<1x1x16x16xf32>,
    %61 = arith.extui %15 : i1 to i32
    %c0_i32_46 = arith.constant 0 : i32
    %62 = arith.cmpi ne, %61, %c0_i32_46 : i32
    scf.if %62 {
      %c0_47 = arith.constant 0 : index
      %c0_48 = arith.constant 0 : index
      %c0_49 = arith.constant 0 : index
      %c0_50 = arith.constant 0 : index
      %63 = vector.load %arg5[%c0_47, %c0_48, %c0_49, %c0_50] : memref<1x3x16x16xf32, #tpu.memory_space<vmem>>, vector<1x3x16x16xf32>
      %cst_51 = arith.constant 0.000000e+00 : f32
      %cst_52 = arith.constant 1.000000e+00 : f32
      %64 = vector.broadcast %cst_51 : f32 to vector<1x3x16x16xf32>
      %65 = arith.maximumf %64, %63 : vector<1x3x16x16xf32>
      %66 = vector.broadcast %cst_52 : f32 to vector<1x3x16x16xf32>
      %67 = arith.minimumf %66, %65 : vector<1x3x16x16xf32>
      %c0_53 = arith.constant 0 : index
      %c0_54 = arith.constant 0 : index
      %c0_55 = arith.constant 0 : index
      %c0_56 = arith.constant 0 : index
      %68 = vector.load %arg5[%c0_53, %c0_54, %c0_55, %c0_56] : memref<1x3x16x16xf32, #tpu.memory_space<vmem>>, vector<1x3x16x16xf32>
      tpu.vector_store %arg5[%c0_53, %c0_54, %c0_55, %c0_56], %67 {strides = array<i32>} : memref<1x3x16x16xf32, #tpu.memory_space<vmem>>, vector<1x3x16x16xf32>,
    } else {
    }
    return
  }
  func.func @transform_0(%arg0: i32, %arg1: memref<6xi32, #tpu.memory_space<smem>>) -> (i32, i32, i32) {
    %c0_i32 = arith.constant 0 : i32
    %c0_i32_0 = arith.constant 0 : i32
    %c0_i32_1 = arith.constant 0 : i32
    return %arg0, %c0_i32, %c0_i32_0 : i32, i32, i32
  }
  func.func @transform_1(%arg0: i32, %arg1: memref<6xi32, #tpu.memory_space<smem>>) -> (i32, i32, i32) {
    %c0_i32 = arith.constant 0 : i32
    %c0_i32_0 = arith.constant 0 : i32
    %c0_i32_1 = arith.constant 0 : i32
    return %arg0, %c0_i32, %c0_i32_0 : i32, i32, i32
  }
  func.func @transform_2(%arg0: i32, %arg1: memref<6xi32, #tpu.memory_space<smem>>) -> (i32, i32) {
    %c0_i32 = arith.constant 0 : i32
    %c0_i32_0 = arith.constant 0 : i32
    %c0_i32_1 = arith.constant 0 : i32
    return %c0_i32, %c0_i32_0 : i32, i32
  }
  func.func @transform_3(%arg0: i32, %arg1: memref<6xi32, #tpu.memory_space<smem>>) -> (i32, i32, i32, i32) {
    %0 = arith.index_cast %arg0 : i32 to index
    %1 = memref.load %arg1[%0] : memref<6xi32, #tpu.memory_space<smem>>
    %c0_i32 = arith.constant 0 : i32
    %c0_i32_0 = arith.constant 0 : i32
    %c0_i32_1 = arith.constant 0 : i32
    %c0_i32_2 = arith.constant 0 : i32
    return %1, %c0_i32, %c0_i32_0, %c0_i32_1 : i32, i32, i32, i32
  }
  func.func @transform_4(%arg0: i32, %arg1: memref<6xi32, #tpu.memory_space<smem>>) -> (i32, i32, i32, i32) {
    %0 = arith.index_cast %arg0 : i32 to index
    %1 = memref.load %arg1[%0] : memref<6xi32, #tpu.memory_space<smem>>
    %c0_i32 = arith.constant 0 : i32
    %c0_i32_0 = arith.constant 0 : i32
    %c0_i32_1 = arith.constant 0 : i32
    %c0_i32_2 = arith.constant 0 : i32
    return %1, %c0_i32, %c0_i32_0, %c0_i32_1 : i32, i32, i32, i32
  }
}

</mosaic_0001>

<llo_original>
// kernel: tpu_custom_call.1
$region0: #{tpu_custom_call.1}
  #allocation0 [shape = 'u32[]', space=smem, size = 0x4, offset = 0x4, fixed_abs, tag = 'smem constant byte address 0x4 - core index']
  #allocation1 [shape = 'u32[144,128]{1,0:T(1,128)}', space=vmem, size = 0x12000, scoped, tag = 'internal scratch']
  #allocation2 [shape = 's32[1]{0}', space=sflag, size = 0x4, scoped, tag = 'scoped memory for tpu_custom_call.1']
  #allocation3 [shape = 'u8[512]{0}', space=smem, size = 0x200, scoped, tag = 'prefetched SMEM operand 0']
  %s0 = inlined_call_operand.vmem [shape: s32[6], index: 0, kind: input, shape index: {}]
  %s1 = inlined_call_operand.vmem [shape: f32[6,16,8], index: 1, kind: input, shape index: {}]
  %s2 = inlined_call_operand.vmem [shape: f32[6,8,16], index: 2, kind: input, shape index: {}]
  %s3 = inlined_call_operand.vmem [shape: f32[24,8], index: 3, kind: input, shape index: {}]
  %s4 = inlined_call_operand.hbm [shape: f32[2,3,16,16], index: 4, kind: output, shape index: {0}]
  %s5 = inlined_call_operand.hbm [shape: f32[2,1,16,16], index: 5, kind: output, shape index: {1}]
  %6 = xla_tuple %s4, %s5
  %s7 = sld [smem:[#allocation0]]
  $region61: #{tpu_custom_call.1} parent=0
    _
  %s9 = ssub.s32 1, %s7
  %s10 = scalar_select 0, %s9, %s7
  %s11 = sshll.u32 %s0, 4
  %s12 = int_to_ptr.vmem [resolvable:$true] %s11
  %14 = dma.vmem_to_smem %s12, 16, [#allocation3], [#allocation2]
  %15 = dma.done [#allocation2], 16
  %16 = sfence
  $region1: #{tpu_custom_call.1} parent=0
    #allocation4 [shape = 'u8[49152]{0}', space=vmem, size = 0xc000, scoped, tag = 'output window, operand 0']
    #allocation5 [shape = 's32[2]{0}', space=sflag, size = 0x8, scoped, tag = 'scoped memory for tpu_custom_call.1']
    #allocation6 [shape = 'u8[16384]{0}', space=vmem, size = 0x4000, scoped, tag = 'output window, operand 1']
    #allocation7 [shape = 's32[2]{0}', space=sflag, size = 0x8, scoped, tag = 'scoped memory for tpu_custom_call.1']
    %17 = vsyncpa [#allocation5], 0
    %s18 = scalar_lea.sflag [#allocation5], 1
    %19 = vsyncpa %s18, 0
    %20 = vsyncpa [#allocation7], 0
    %s21 = scalar_lea.sflag [#allocation7], 1
    %22 = vsyncpa %s21, 0
    loop: start=0, step=1, limit=8
    $region2: #{tpu_custom_call.1} parent=1 // loop_pre_header
      _
    $region3: #{tpu_custom_call.1} parent=1 // loop_header
      %s24 = sphi 0, %s28
      %p25 = scmp.ge.s32.totalorder %s24, 8
      %s34 = sphi 0, %s36
      %s37 = sphi 0, %s34
      %s38 = sphi 0, %s37
      %s54 = sphi 0, %s38
      %s60 = sphi 0, %s62
      %s63 = sphi 0, %s60
      %s64 = sphi 0, %s63
      %s80 = sphi 0, %s64
      %s84 = sphi 0, %s84
      %s86 = sphi 0, %s84
      %s87 = sphi 0, %s86
      %s101 = sphi 0, %s87
      %s109 = sphi 0, %s111
      %s112 = sphi 0, %s109
      %s113 = sphi 0, %s112
      %s129 = sphi 0, %s113
      %s137 = sphi 0, %s139
      %s140 = sphi 0, %s137
      %s141 = sphi 0, %s140
      %s157 = sphi 0, %s141
    $region4: #{tpu_custom_call.1} parent=1 // loop_header_branch
      %27 = sbr.rel (%p25) target = $region8
    $region5: #{tpu_custom_call.1} parent=1 // loop_body
      %s29 = ssub.s32 %s24, 1
      %s30 = ssub.s32 %s24, 2
      %s31 = sadd.s32 %s24, 1
      %s32 = ssub.s32 %s24, %s31
      %p33 = scmp.eq.s32.totalorder %s32, 0
      %s35 = sadd.s32 %s34, 1
      %s36 = scalar_select %p33, %s34, %s35
      %p39 = pneg %p33
      %p40 = scmp.eq.s32.totalorder %s24, 5
      %p41 = por %p39, %p40
      %p42 = scmp.ne.s32.totalorder %s34, %s37
      %p43 = scmp.eq.s32.totalorder %s24, 0
      %p44 = por %p42, %p43
      %p45 = scmp.ne.s32.totalorder %s34, %s37
      %p46 = scmp.eq.s32.totalorder %s29, 5
      %p47 = por %p45, %p46
      %p48 = scmp.ne.s32.totalorder %s37, %s38
      %p49 = scmp.eq.s32.totalorder %s29, 0
      %p50 = por %p48, %p49
      %p51 = scmp.ne.s32.totalorder %s37, %s38
      %p52 = scmp.eq.s32.totalorder %s30, 5
      %p53 = por %p51, %p52
      %p55 = scmp.ne.s32.totalorder %s38, %s54
      %p56 = scmp.eq.s32.totalorder %s30, 0
      %p57 = por %p55, %p56
      %s58 = ssub.s32 %s24, %s31
      %p59 = scmp.eq.s32.totalorder %s58, 0
      %s61 = sadd.s32 %s60, 1
      %s62 = scalar_select %p59, %s60, %s61
      %p65 = pneg %p59
      %p66 = scmp.eq.s32.totalorder %s24, 5
      %p67 = por %p65, %p66
      %p68 = scmp.ne.s32.totalorder %s60, %s63
      %p69 = scmp.eq.s32.totalorder %s24, 0
      %p70 = por %p68, %p69
      %p71 = scmp.ne.s32.totalorder %s60, %s63
      %p72 = scmp.eq.s32.totalorder %s29, 5
      %p73 = por %p71, %p72
      %p74 = scmp.ne.s32.totalorder %s63, %s64
      %p75 = scmp.eq.s32.totalorder %s29, 0
      %p76 = por %p74, %p75
      %p77 = scmp.ne.s32.totalorder %s63, %s64
      %p78 = scmp.eq.s32.totalorder %s30, 5
      %p79 = por %p77, %p78
      %p81 = scmp.ne.s32.totalorder %s64, %s80
      %p82 = scmp.eq.s32.totalorder %s30, 0
      %p83 = por %p81, %p82
      %s85 = sadd.s32 %s84, 1
      %p88 = scmp.eq.s32.totalorder %s24, 5
      %p89 = scmp.ne.s32.totalorder %s84, %s86
      %p90 = scmp.eq.s32.totalorder %s24, 0
      %p91 = por %p89, %p90
      %p92 = scmp.ne.s32.totalorder %s84, %s86
      %p93 = scmp.eq.s32.totalorder %s29, 5
      %p94 = por %p92, %p93
      %p95 = scmp.ne.s32.totalorder %s86, %s87
      %p96 = scmp.eq.s32.totalorder %s29, 0
      %p97 = por %p95, %p96
      %p98 = scmp.ne.s32.totalorder %s86, %s87
      %p99 = scmp.eq.s32.totalorder %s30, 5
      %p100 = por %p98, %p99
      %p102 = scmp.ne.s32.totalorder %s87, %s101
      %p103 = scmp.eq.s32.totalorder %s30, 0
      %p104 = por %p102, %p103
      %s105 = sld [smem:[#allocation3 + %s24]]
      %s106 = sld [smem:[#allocation3 + %s31]]
      %s107 = ssub.s32 %s105, %s106
      %p108 = scmp.eq.s32.totalorder %s107, 0
      %s110 = sadd.s32 %s109, 1
      %s111 = scalar_select %p108, %s109, %s110
      %p114 = pneg %p108
      %p115 = scmp.eq.s32.totalorder %s24, 5
      %p116 = por %p114, %p115
      %p117 = scmp.ne.s32.totalorder %s109, %s112
      %p118 = scmp.eq.s32.totalorder %s24, 0
      %p119 = por %p117, %p118
      %p120 = scmp.ne.s32.totalorder %s109, %s112
      %p121 = scmp.eq.s32.totalorder %s29, 5
      %p122 = por %p120, %p121
      %p123 = scmp.ne.s32.totalorder %s112, %s113
      %p124 = scmp.eq.s32.totalorder %s29, 0
      %p125 = por %p123, %p124
      %p126 = scmp.ne.s32.totalorder %s112, %s113
      %p127 = scmp.eq.s32.totalorder %s30, 5
      %p128 = por %p126, %p127
      %p130 = scmp.ne.s32.totalorder %s113, %s129
      %p131 = scmp.eq.s32.totalorder %s30, 0
      %p132 = por %p130, %p131
      %s133 = sld [smem:[#allocation3 + %s24]]
      %s134 = sld [smem:[#allocation3 + %s31]]
      %s135 = ssub.s32 %s133, %s134
      %p136 = scmp.eq.s32.totalorder %s135, 0
      %s138 = sadd.s32 %s137, 1
      %s139 = scalar_select %p136, %s137, %s138
      %p142 = pneg %p136
      %p143 = scmp.eq.s32.totalorder %s24, 5
      %p144 = por %p142, %p143
      %p145 = scmp.ne.s32.totalorder %s137, %s140
      %p146 = scmp.eq.s32.totalorder %s24, 0
      %p147 = por %p145, %p146
      %p148 = scmp.ne.s32.totalorder %s137, %s140
      %p149 = scmp.eq.s32.totalorder %s29, 5
      %p150 = por %p148, %p149
      %p151 = scmp.ne.s32.totalorder %s140, %s141
      %p152 = scmp.eq.s32.totalorder %s29, 0
      %p153 = por %p151, %p152
      %p154 = scmp.ne.s32.totalorder %s140, %s141
      %p155 = scmp.eq.s32.totalorder %s30, 5
      %p156 = por %p154, %p155
      %p158 = scmp.ne.s32.totalorder %s141, %s157
      %p159 = scmp.eq.s32.totalorder %s30, 0
      %p160 = por %p158, %p159
      %p161 = scmp.le.s32.totalorder 1, %s24
      %p162 = scmp.lt.s32.totalorder %s24, 7
      %p163 = pnand %p161, %p162
      %p164 = pneg %p163
      // Predicated region
      $region9: #{tpu_custom_call.1} parent=5 // pred_check
        _
      $region10: #{tpu_custom_call.1} parent=5 // pred_check_branch
        %166 = sbr.rel (%p163) target = $region12
      $region11: #{tpu_custom_call.1} parent=5 // pred_region
        %s167 = ssub.s32 %s24, 1
        // Predicated region
        $region13: #{tpu_custom_call.1} parent=11 // pred_check
          %p168 = pneg %p97
        $region14: #{tpu_custom_call.1} parent=11 // pred_check_branch
          %170 = sbr.rel (%p168) target = $region16
        $region15: #{tpu_custom_call.1} parent=11 // pred_region
          _
        $region16: #{tpu_custom_call.1} parent=11 // pred_fallthru
          _
      $region12: #{tpu_custom_call.1} parent=5 // pred_fallthru
        _
      %p171 = scmp.lt.s32.totalorder %s24, 6
      // Predicated region
      $region17: #{tpu_custom_call.1} parent=5 // pred_check
        %p172 = pneg %p171
      $region18: #{tpu_custom_call.1} parent=5 // pred_check_branch
        %174 = sbr.rel (%p172) target = $region20
      $region19: #{tpu_custom_call.1} parent=5 // pred_region
        // Predicated region
        $region21: #{tpu_custom_call.1} parent=19 // pred_check
          %p175 = pneg %p44
        $region22: #{tpu_custom_call.1} parent=19 // pred_check_branch
          %177 = sbr.rel (%p175) target = $region24
        $region23: #{tpu_custom_call.1} parent=19 // pred_region
          %p178 = scmp.lt.s32.totalorder %s24, 5
          %s179 = scalar_select %p178, %s24, 5
          %s180 = smul.addr %s179, 2
          %s181 = smul.addr %s180, 8
          %s182 = scalar_lea.vmem %s1, %s181
        $region24: #{tpu_custom_call.1} parent=19 // pred_fallthru
          _
        // Predicated region
        $region25: #{tpu_custom_call.1} parent=19 // pred_check
          %p183 = pneg %p70
        $region26: #{tpu_custom_call.1} parent=19 // pred_check_branch
          %185 = sbr.rel (%p183) target = $region28
        $region27: #{tpu_custom_call.1} parent=19 // pred_region
          %p186 = scmp.lt.s32.totalorder %s24, 5
          %s187 = scalar_select %p186, %s24, 5
          %s188 = smul.addr %s187, 8
          %s189 = scalar_lea.vmem %s2, %s188
        $region28: #{tpu_custom_call.1} parent=19 // pred_fallthru
          _
      $region20: #{tpu_custom_call.1} parent=5 // pred_fallthru
        _
      %p190 = scmp.le.s32.totalorder 1, %s24
      %p191 = scmp.lt.s32.totalorder %s24, 7
      %p192 = pnand %p190, %p191
      %p193 = pneg %p192
      // Predicated region
      $region29: #{tpu_custom_call.1} parent=5 // pred_check
        _
      $region30: #{tpu_custom_call.1} parent=5 // pred_check_branch
        %195 = sbr.rel (%p192) target = $region32
      $region31: #{tpu_custom_call.1} parent=5 // pred_region
        %s196 = ssub.s32 %s24, 1
        %p197 = scmp.lt.s32.totalorder %s29, 5
        %s198 = scalar_select %p197, %s29, 5
        %s199 = smul.addr %s198, 2
        %s200 = smul.addr %s199, 8
        %s201 = scalar_lea.vmem %s1, %s200
        %p202 = pneg %p50
        %p203 = pneg %p47
        %p204 = scmp.lt.s32.totalorder %s29, 5
        %s205 = scalar_select %p204, %s29, 5
        %s206 = smul.addr %s205, 8
        %s207 = scalar_lea.vmem %s2, %s206
        %p208 = pneg %p76
        %p209 = pneg %p73
        %p210 = pneg %p97
        %p211 = pneg %p94
        %p212 = pneg %p125
        %p213 = pneg %p122
        %s214 = sand.u32 %s112, 1
        %s215 = scalar_lea.sflag [#allocation5], %s214
        %s216 = sand.u32 %s112, 1
        %s217 = smul.addr %s216, 48
        %s218 = scalar_lea.vmem [#allocation4], %s217
        %p219 = pneg %p153
        %p220 = pneg %p150
        %s221 = sand.u32 %s140, 1
        %s222 = scalar_lea.sflag [#allocation7], %s221
        %s223 = sand.u32 %s140, 1
        %s224 = smul.addr %s223, 16
        %s225 = scalar_lea.vmem [#allocation6], %s224
        %p226 = scmp.lt.s32.totalorder %s29, 5
        %s227 = scalar_select %p226, %s29, 5
        %s228 = smul.addr %s227, 2
        %s229 = smul.addr %s228, 8
        %s230 = scalar_lea.vmem %s1, %s229
        %p231 = scmp.lt.s32.totalorder %s29, 5
        %s232 = scalar_select %p231, %s29, 5
        %s233 = smul.addr %s232, 8
        %s234 = scalar_lea.vmem %s2, %s233
        %s235 = sld [smem:[#allocation3 + %s29]]
        %s236 = sld [smem:[#allocation3 + %s29]]
        %s237 = sld [smem:[#allocation3 + %s29]]
        %s238 = ssub.s32 %s29, 1
        %p239 = scmp.gt.s32.totalorder %s238, 0
        %s240 = scalar_select %p239, %s238, 0
        %s241 = sld [smem:[#allocation3 + %s240]]
        %s242 = sadd.s32 %s29, 1
        %p243 = scmp.lt.s32.totalorder %s242, 5
        %s244 = scalar_select %p243, %s242, 5
        %s245 = sld [smem:[#allocation3 + %s244]]
        %p246 = scmp.eq.s32.totalorder %s29, 0
        %p247 = scmp.ne.s32.totalorder %s241, %s237
        %p248 = por %p246, %p247
        %p249 = scmp.eq.s32.totalorder %s29, 5
        %p250 = scmp.ne.s32.totalorder %s245, %s237
        %p251 = por %p249, %p250
        // Predicated region
        $region33: #{tpu_custom_call.1} parent=31 // pred_check
          %p252 = pneg %p248
        $region34: #{tpu_custom_call.1} parent=31 // pred_check_branch
          %254 = sbr.rel (%p252) target = $region36
        $region35: #{tpu_custom_call.1} parent=31 // pred_region
          %vm255 = vcmask 130048
          %256 = vst.msk [vmem:[%s218] sm:$0xff] %vm255, 0.0
          %257 = vst.msk [vmem:[%s218 + $0x8] sm:$0xff] %vm255, 0.0
          %258 = vst.msk [vmem:[%s218 + $0x10] sm:$0xff] %vm255, 0.0
          %259 = vst.msk [vmem:[%s218 + $0x18] sm:$0xff] %vm255, 0.0
          %260 = vst.msk [vmem:[%s218 + $0x20] sm:$0xff] %vm255, 0.0
          %261 = vst.msk [vmem:[%s218 + $0x28] sm:$0xff] %vm255, 0.0
          %262 = vst.msk [vmem:[%s225] sm:$0xff] %vm255, 0.0
          %263 = vst.msk [vmem:[%s225 + $0x8] sm:$0xff] %vm255, 0.0
        $region36: #{tpu_custom_call.1} parent=31 // pred_fallthru
          _
        %v264 = vld [vmem:[%s230] sm:$0xff]
        %v265 = vld [vmem:[%s230 + $0x8] sm:$0xff]
        %v266 = vld [vmem:[%s234] sm:$0xff]
        %vm267 = vcmask 64512
        %v268 = vsel %vm267, %v264, 0.0
        %269 = vadd.xlane.f32.xlu0 %v268
        %v270 = vpop.xlane.xlu0 %269
        %v271 = vsel %vm267, %v265, 0.0
        %272 = vadd.xlane.f32.xlu0 %v271
        %v273 = vpop.xlane.xlu0 %272
        %vm274 = vcmask 130048
        %v275 = vsel %vm274, %v266, 0.0
        %v276 = vrot.slane %v275, 4
        %v277 = vadd.f32 %v275, %v276
        %v278 = vrot.slane %v277, 2
        %v279 = vadd.f32 %v277, %v278
        %v280 = vrot.slane %v279, 1
        %v281 = vadd.f32 %v279, %v280
        %v282 = vld [vmem:[%s225] sm:$0xff]
        %v283 = vld [vmem:[%s225 + $0x8] sm:$0xff]
        %v284 = vmul.f32 %v270, %v281
        %v285 = vmul.f32 %v273, %v281
        %v286 = vadd.f32 %v282, %v284
        %v287 = vadd.f32 %v283, %v285
        %288 = vst.msk [vmem:[%s225] sm:$0xff] %vm274, %v286
        %289 = vst.msk [vmem:[%s225 + $0x8] sm:$0xff] %vm274, %v287
        %v290 = vld [vmem:[%s3] sm:$0xff]
        %v291 = vld [vmem:[%s3 + $0x8] sm:$0xff]
        %v292 = vld [vmem:[%s3 + $0x10] sm:$0xff]
        %v294 = vsel %vm267, %v290, 0
        %v297 = vsel %vm267, %v291, 0
        %v300 = vsel %vm267, %v292, 0
        %302 = vmatprep.subr.mxu0 0.0
        %303 = vmatpush1.msra.mxu0 0.0
        %304 = vmatprep.subr.mxu0 0.0
        %305 = vmatpush1.msra.mxu0 0.0
        %306 = vmatprep.subr.mxu0 0.0
        %307 = vmatpush1.msra.mxu0 0.0
        %308 = vmatprep.subr.mxu0 0.0
        %309 = vmatpush1.msra.mxu0 0.0
        %310 = vmatprep.subr.mxu0 0.0
        %311 = vmatpush1.msra.mxu0 0.0
        %312 = vmatprep.subr.mxu0 0.0
        %313 = vmatpush1.msra.mxu0 0.0
        %314 = vmatprep.subr.mxu0 0.0
        %315 = vmatpush1.msra.mxu0 0.0
        %316 = vmatprep.subr.mxu0 0.0
        %317 = vmatpush1.msra.mxu0 0.0
        %318 = vmatprep.subr.mxu0 0.0
        %319 = vmatpush1.msra.mxu0 0.0
        %320 = vmatprep.subr.mxu0 0.0
        %321 = vmatpush1.msra.mxu0 0.0
        %322 = vmatprep.subr.mxu0 0.0
        %323 = vmatpush1.msra.mxu0 0.0
        %324 = vmatprep.subr.mxu0 0.0
        %325 = vmatpush1.msra.mxu0 0.0
        %326 = vmatprep.subr.mxu0 0.0
        %327 = vmatpush1.msra.mxu0 0.0
        %328 = vmatprep.subr.mxu0 0.0
        %329 = vmatpush1.msra.mxu0 0.0
        %330 = vmatprep.subr.mxu0 0.0
        %331 = vmatpush1.msra.mxu0 0.0
        %332 = vmatprep.subr.mxu0 0.0
        %333 = vmatpush1.msra.mxu0 %v266
        %334 = vmatprep.subr.mxu0 0.0
        %335 = vmatpush2.msra.mxu0 0.0
        %336 = vmatprep.subr.mxu0 0.0
        %337 = vmatpush2.msra.mxu0 0.0
        %338 = vmatprep.subr.mxu0 0.0
        %339 = vmatpush2.msra.mxu0 0.0
        %340 = vmatprep.subr.mxu0 0.0
        %341 = vmatpush2.msra.mxu0 0.0
        %342 = vmatprep.subr.mxu0 0.0
        %343 = vmatpush2.msra.mxu0 0.0
        %344 = vmatprep.subr.mxu0 0.0
        %345 = vmatpush2.msra.mxu0 0.0
        %346 = vmatprep.subr.mxu0 0.0
        %347 = vmatpush2.msra.mxu0 0.0
        %348 = vmatprep.subr.mxu0 0.0
        %349 = vmatpush2.msra.mxu0 0.0
        %350 = vmatprep.subr.mxu0 0.0
        %351 = vmatpush2.msra.mxu0 0.0
        %352 = vmatprep.subr.mxu0 0.0
        %353 = vmatpush2.msra.mxu0 0.0
        %354 = vmatprep.subr.mxu0 0.0
        %355 = vmatpush2.msra.mxu0 0.0
        %356 = vmatprep.subr.mxu0 0.0
        %357 = vmatpush2.msra.mxu0 0.0
        %358 = vmatprep.subr.mxu0 0.0
        %359 = vmatpush2.msra.mxu0 0.0
        %360 = vmatprep.subr.mxu0 0.0
        %361 = vmatpush2.msra.mxu0 0.0
        %362 = vmatprep.subr.mxu0 0.0
        %363 = vmatpush2.msra.mxu0 0.0
        %364 = vmatprep.subr.mxu0 0.0
        %365 = vmatpush2.msra.mxu0 0.0
        %366 = vmatprep.mubr.f32.mxu0 0.0
        %367 = vmatmul.mubr.f32.gmra.mxu0 %v294
        %v368 = vpop.f32.mrf.mxu0
        %v369 = vadd.f32 0.0, %v368
        %v370 = vpop.f32.mrf.mxu0
        %371 = vmatprep.mubr.f32.mxu0 0.0
        %372 = vmatmul.mubr.f32.gmra.mxu0 %v297
        %v373 = vpop.f32.mrf.mxu0
        %v374 = vadd.f32 0.0, %v373
        %v375 = vpop.f32.mrf.mxu0
        %376 = vmatprep.mubr.f32.mxu0 0.0
        %377 = vmatmul.mubr.f32.gmra.mxu0 %v300
        %v378 = vpop.f32.mrf.mxu0
        %v379 = vadd.f32 0.0, %v378
        %v380 = vpop.f32.mrf.mxu0
        %381 = vdwg.mxu0
        %v382 = vld [vmem:[%s218] sm:$0xff]
        %v383 = vld [vmem:[%s218 + $0x8] sm:$0xff]
        %v385 = vsel %vm267, %v264, 0
        %v388 = vsel %vm267, %v265, 0
        %390 = vmatprep.subr.mxu0 0.0
        %391 = vmatpush1.msra.mxu0 0.0
        %392 = vmatprep.subr.mxu0 0.0
        %393 = vmatpush1.msra.mxu0 0.0
        %394 = vmatprep.subr.mxu0 0.0
        %395 = vmatpush1.msra.mxu0 0.0
        %396 = vmatprep.subr.mxu0 0.0
        %397 = vmatpush1.msra.mxu0 0.0
        %398 = vmatprep.subr.mxu0 0.0
        %399 = vmatpush1.msra.mxu0 0.0
        %400 = vmatprep.subr.mxu0 0.0
        %401 = vmatpush1.msra.mxu0 0.0
        %402 = vmatprep.subr.mxu0 0.0
        %403 = vmatpush1.msra.mxu0 0.0
        %404 = vmatprep.subr.mxu0 0.0
        %405 = vmatpush1.msra.mxu0 0.0
        %406 = vmatprep.subr.mxu0 0.0
        %407 = vmatpush1.msra.mxu0 0.0
        %408 = vmatprep.subr.mxu0 0.0
        %409 = vmatpush1.msra.mxu0 0.0
        %410 = vmatprep.subr.mxu0 0.0
        %411 = vmatpush1.msra.mxu0 0.0
        %412 = vmatprep.subr.mxu0 0.0
        %413 = vmatpush1.msra.mxu0 0.0
        %414 = vmatprep.subr.mxu0 0.0
        %415 = vmatpush1.msra.mxu0 0.0
        %416 = vmatprep.subr.mxu0 0.0
        %417 = vmatpush1.msra.mxu0 0.0
        %418 = vmatprep.subr.mxu0 0.0
        %419 = vmatpush1.msra.mxu0 0.0
        %420 = vmatprep.subr.mxu0 0.0
        %421 = vmatpush1.msra.mxu0 %v369
        %422 = vmatprep.subr.mxu0 0.0
        %423 = vmatpush2.msra.mxu0 0.0
        %424 = vmatprep.subr.mxu0 0.0
        %425 = vmatpush2.msra.mxu0 0.0
        %426 = vmatprep.subr.mxu0 0.0
        %427 = vmatpush2.msra.mxu0 0.0
        %428 = vmatprep.subr.mxu0 0.0
        %429 = vmatpush2.msra.mxu0 0.0
        %430 = vmatprep.subr.mxu0 0.0
        %431 = vmatpush2.msra.mxu0 0.0
        %432 = vmatprep.subr.mxu0 0.0
        %433 = vmatpush2.msra.mxu0 0.0
        %434 = vmatprep.subr.mxu0 0.0
        %435 = vmatpush2.msra.mxu0 0.0
        %436 = vmatprep.subr.mxu0 0.0
        %437 = vmatpush2.msra.mxu0 0.0
        %438 = vmatprep.subr.mxu0 0.0
        %439 = vmatpush2.msra.mxu0 0.0
        %440 = vmatprep.subr.mxu0 0.0
        %441 = vmatpush2.msra.mxu0 0.0
        %442 = vmatprep.subr.mxu0 0.0
        %443 = vmatpush2.msra.mxu0 0.0
        %444 = vmatprep.subr.mxu0 0.0
        %445 = vmatpush2.msra.mxu0 0.0
        %446 = vmatprep.subr.mxu0 0.0
        %447 = vmatpush2.msra.mxu0 0.0
        %448 = vmatprep.subr.mxu0 0.0
        %449 = vmatpush2.msra.mxu0 0.0
        %450 = vmatprep.subr.mxu0 0.0
        %451 = vmatpush2.msra.mxu0 0.0
        %452 = vmatprep.subr.mxu0 0.0
        %453 = vmatpush2.msra.mxu0 0.0
        %454 = vmatprep.mubr.f32.mxu0 0.0
        %455 = vmatmul.mubr.f32.gmra.mxu0 %v385
        %v456 = vpop.f32.mrf.mxu0
        %v457 = vadd.f32 0.0, %v456
        %v458 = vpop.f32.mrf.mxu0
        %459 = vmatprep.mubr.f32.mxu0 0.0
        %460 = vmatmul.mubr.f32.gmra.mxu0 %v388
        %v461 = vpop.f32.mrf.mxu0
        %v462 = vadd.f32 0.0, %v461
        %v463 = vpop.f32.mrf.mxu0
        %464 = vdwg.mxu0
        %v465 = vadd.f32 %v382, %v457
        %v466 = vadd.f32 %v383, %v462
        %467 = vst.msk [vmem:[%s218] sm:$0xff] %vm274, %v465
        %468 = vst.msk [vmem:[%s218 + $0x8] sm:$0xff] %vm274, %v466
        %s469 = scalar_lea.vmem %s218, 16 [#allocation4]
        %v470 = vld [vmem:[%s469] sm:$0xff]
        %v471 = vld [vmem:[%s469 + $0x8] sm:$0xff]
        %472 = vmatprep.subr.mxu0 0.0
        %473 = vmatpush1.msra.mxu0 0.0
        %474 = vmatprep.subr.mxu0 0.0
        %475 = vmatpush1.msra.mxu0 0.0
        %476 = vmatprep.subr.mxu0 0.0
        %477 = vmatpush1.msra.mxu0 0.0
        %478 = vmatprep.subr.mxu0 0.0
        %479 = vmatpush1.msra.mxu0 0.0
        %480 = vmatprep.subr.mxu0 0.0
        %481 = vmatpush1.msra.mxu0 0.0
        %482 = vmatprep.subr.mxu0 0.0
        %483 = vmatpush1.msra.mxu0 0.0
        %484 = vmatprep.subr.mxu0 0.0
        %485 = vmatpush1.msra.mxu0 0.0
        %486 = vmatprep.subr.mxu0 0.0
        %487 = vmatpush1.msra.mxu0 0.0
        %488 = vmatprep.subr.mxu0 0.0
        %489 = vmatpush1.msra.mxu0 0.0
        %490 = vmatprep.subr.mxu0 0.0
        %491 = vmatpush1.msra.mxu0 0.0
        %492 = vmatprep.subr.mxu0 0.0
        %493 = vmatpush1.msra.mxu0 0.0
        %494 = vmatprep.subr.mxu0 0.0
        %495 = vmatpush1.msra.mxu0 0.0
        %496 = vmatprep.subr.mxu0 0.0
        %497 = vmatpush1.msra.mxu0 0.0
        %498 = vmatprep.subr.mxu0 0.0
        %499 = vmatpush1.msra.mxu0 0.0
        %500 = vmatprep.subr.mxu0 0.0
        %501 = vmatpush1.msra.mxu0 0.0
        %502 = vmatprep.subr.mxu0 0.0
        %503 = vmatpush1.msra.mxu0 %v374
        %504 = vmatprep.subr.mxu0 0.0
        %505 = vmatpush2.msra.mxu0 0.0
        %506 = vmatprep.subr.mxu0 0.0
        %507 = vmatpush2.msra.mxu0 0.0
        %508 = vmatprep.subr.mxu0 0.0
        %509 = vmatpush2.msra.mxu0 0.0
        %510 = vmatprep.subr.mxu0 0.0
        %511 = vmatpush2.msra.mxu0 0.0
        %512 = vmatprep.subr.mxu0 0.0
        %513 = vmatpush2.msra.mxu0 0.0
        %514 = vmatprep.subr.mxu0 0.0
        %515 = vmatpush2.msra.mxu0 0.0
        %516 = vmatprep.subr.mxu0 0.0
        %517 = vmatpush2.msra.mxu0 0.0
        %518 = vmatprep.subr.mxu0 0.0
        %519 = vmatpush2.msra.mxu0 0.0
        %520 = vmatprep.subr.mxu0 0.0
        %521 = vmatpush2.msra.mxu0 0.0
        %522 = vmatprep.subr.mxu0 0.0
        %523 = vmatpush2.msra.mxu0 0.0
        %524 = vmatprep.subr.mxu0 0.0
        %525 = vmatpush2.msra.mxu0 0.0
        %526 = vmatprep.subr.mxu0 0.0
        %527 = vmatpush2.msra.mxu0 0.0
        %528 = vmatprep.subr.mxu0 0.0
        %529 = vmatpush2.msra.mxu0 0.0
        %530 = vmatprep.subr.mxu0 0.0
        %531 = vmatpush2.msra.mxu0 0.0
        %532 = vmatprep.subr.mxu0 0.0
        %533 = vmatpush2.msra.mxu0 0.0
        %534 = vmatprep.subr.mxu0 0.0
        %535 = vmatpush2.msra.mxu0 0.0
        %536 = vmatprep.mubr.f32.mxu0 0.0
        %537 = vmatmul.mubr.f32.gmra.mxu0 %v385
        %v538 = vpop.f32.mrf.mxu0
        %v539 = vadd.f32 0.0, %v538
        %v540 = vpop.f32.mrf.mxu0
        %541 = vmatprep.mubr.f32.mxu0 0.0
        %542 = vmatmul.mubr.f32.gmra.mxu0 %v388
        %v543 = vpop.f32.mrf.mxu0
        %v544 = vadd.f32 0.0, %v543
        %v545 = vpop.f32.mrf.mxu0
        %546 = vdwg.mxu0
        %v547 = vadd.f32 %v470, %v539
        %v548 = vadd.f32 %v471, %v544
        %549 = vst.msk [vmem:[%s469] sm:$0xff] %vm274, %v547
        %550 = vst.msk [vmem:[%s469 + $0x8] sm:$0xff] %vm274, %v548
        %s551 = scalar_lea.vmem %s218, 32 [#allocation4]
        %v552 = vld [vmem:[%s551] sm:$0xff]
        %v553 = vld [vmem:[%s551 + $0x8] sm:$0xff]
        %554 = vmatprep.subr.mxu0 0.0
        %555 = vmatpush1.msra.mxu0 0.0
        %556 = vmatprep.subr.mxu0 0.0
        %557 = vmatpush1.msra.mxu0 0.0
        %558 = vmatprep.subr.mxu0 0.0
        %559 = vmatpush1.msra.mxu0 0.0
        %560 = vmatprep.subr.mxu0 0.0
        %561 = vmatpush1.msra.mxu0 0.0
        %562 = vmatprep.subr.mxu0 0.0
        %563 = vmatpush1.msra.mxu0 0.0
        %564 = vmatprep.subr.mxu0 0.0
        %565 = vmatpush1.msra.mxu0 0.0
        %566 = vmatprep.subr.mxu0 0.0
        %567 = vmatpush1.msra.mxu0 0.0
        %568 = vmatprep.subr.mxu0 0.0
        %569 = vmatpush1.msra.mxu0 0.0
        %570 = vmatprep.subr.mxu0 0.0
        %571 = vmatpush1.msra.mxu0 0.0
        %572 = vmatprep.subr.mxu0 0.0
        %573 = vmatpush1.msra.mxu0 0.0
        %574 = vmatprep.subr.mxu0 0.0
        %575 = vmatpush1.msra.mxu0 0.0
        %576 = vmatprep.subr.mxu0 0.0
        %577 = vmatpush1.msra.mxu0 0.0
        %578 = vmatprep.subr.mxu0 0.0
        %579 = vmatpush1.msra.mxu0 0.0
        %580 = vmatprep.subr.mxu0 0.0
        %581 = vmatpush1.msra.mxu0 0.0
        %582 = vmatprep.subr.mxu0 0.0
        %583 = vmatpush1.msra.mxu0 0.0
        %584 = vmatprep.subr.mxu0 0.0
        %585 = vmatpush1.msra.mxu0 %v379
        %586 = vmatprep.subr.mxu0 0.0
        %587 = vmatpush2.msra.mxu0 0.0
        %588 = vmatprep.subr.mxu0 0.0
        %589 = vmatpush2.msra.mxu0 0.0
        %590 = vmatprep.subr.mxu0 0.0
        %591 = vmatpush2.msra.mxu0 0.0
        %592 = vmatprep.subr.mxu0 0.0
        %593 = vmatpush2.msra.mxu0 0.0
        %594 = vmatprep.subr.mxu0 0.0
        %595 = vmatpush2.msra.mxu0 0.0
        %596 = vmatprep.subr.mxu0 0.0
        %597 = vmatpush2.msra.mxu0 0.0
        %598 = vmatprep.subr.mxu0 0.0
        %599 = vmatpush2.msra.mxu0 0.0
        %600 = vmatprep.subr.mxu0 0.0
        %601 = vmatpush2.msra.mxu0 0.0
        %602 = vmatprep.subr.mxu0 0.0
        %603 = vmatpush2.msra.mxu0 0.0
        %604 = vmatprep.subr.mxu0 0.0
        %605 = vmatpush2.msra.mxu0 0.0
        %606 = vmatprep.subr.mxu0 0.0
        %607 = vmatpush2.msra.mxu0 0.0
        %608 = vmatprep.subr.mxu0 0.0
        %609 = vmatpush2.msra.mxu0 0.0
        %610 = vmatprep.subr.mxu0 0.0
        %611 = vmatpush2.msra.mxu0 0.0
        %612 = vmatprep.subr.mxu0 0.0
        %613 = vmatpush2.msra.mxu0 0.0
        %614 = vmatprep.subr.mxu0 0.0
        %615 = vmatpush2.msra.mxu0 0.0
        %616 = vmatprep.subr.mxu0 0.0
        %617 = vmatpush2.msra.mxu0 0.0
        %618 = vmatprep.mubr.f32.mxu0 0.0
        %619 = vmatmul.mubr.f32.gmra.mxu0 %v385
        %v620 = vpop.f32.mrf.mxu0
        %v621 = vadd.f32 0.0, %v620
        %v622 = vpop.f32.mrf.mxu0
        %623 = vmatprep.mubr.f32.mxu0 0.0
        %624 = vmatmul.mubr.f32.gmra.mxu0 %v388
        %v625 = vpop.f32.mrf.mxu0
        %v626 = vadd.f32 0.0, %v625
        %v627 = vpop.f32.mrf.mxu0
        %628 = vdwg.mxu0
        %v629 = vadd.f32 %v552, %v621
        %v630 = vadd.f32 %v553, %v626
        %631 = vst.msk [vmem:[%s551] sm:$0xff] %vm274, %v629
        %632 = vst.msk [vmem:[%s551 + $0x8] sm:$0xff] %vm274, %v630
        // Predicated region
        $region37: #{tpu_custom_call.1} parent=31 // pred_check
          %p633 = pneg %p251
        $region38: #{tpu_custom_call.1} parent=31 // pred_check_branch
          %635 = sbr.rel (%p633) target = $region40
        $region39: #{tpu_custom_call.1} parent=31 // pred_region
          %v636 = vld [vmem:[%s218] sm:$0xff]
          %v637 = vld [vmem:[%s218 + $0x8] sm:$0xff]
          %v638 = vld [vmem:[%s218 + $0x10] sm:$0xff]
          %v639 = vld [vmem:[%s218 + $0x18] sm:$0xff]
          %v640 = vld [vmem:[%s218 + $0x20] sm:$0xff]
          %v641 = vld [vmem:[%s218 + $0x28] sm:$0xff]
          %v642 = vmax.f32 %v636, 0.0
          %v643 = vmax.f32 %v637, 0.0
          %v644 = vmax.f32 %v638, 0.0
          %v645 = vmax.f32 %v639, 0.0
          %v646 = vmax.f32 %v640, 0.0
          %v647 = vmax.f32 %v641, 0.0
          %v648 = vmin.f32 %v642, 1.0
          %v649 = vmin.f32 %v643, 1.0
          %v650 = vmin.f32 %v644, 1.0
          %v651 = vmin.f32 %v645, 1.0
          %v652 = vmin.f32 %v646, 1.0
          %v653 = vmin.f32 %v647, 1.0
          %654 = vst.msk [vmem:[%s218] sm:$0xff] %vm274, %v648
          %655 = vst.msk [vmem:[%s218 + $0x8] sm:$0xff] %vm274, %v649
          %656 = vst.msk [vmem:[%s218 + $0x10] sm:$0xff] %vm274, %v650
          %657 = vst.msk [vmem:[%s218 + $0x18] sm:$0xff] %vm274, %v651
          %658 = vst.msk [vmem:[%s218 + $0x20] sm:$0xff] %vm274, %v652
          %659 = vst.msk [vmem:[%s218 + $0x28] sm:$0xff] %vm274, %v653
        $region40: #{tpu_custom_call.1} parent=31 // pred_fallthru
          _
        %s660 = sand.u32 %s112, 1
        %s661 = scalar_lea.sflag [#allocation5], %s660
        %s662 = sand.u32 %s112, 1
        %s663 = smul.addr %s662, 48
        %s664 = scalar_lea.vmem [#allocation4], %s663
        %s665 = sand.u32 %s140, 1
        %s666 = scalar_lea.sflag [#allocation7], %s665
        %s667 = sand.u32 %s140, 1
        %s668 = smul.addr %s667, 16
        %s669 = scalar_lea.vmem [#allocation6], %s668
        // Predicated region
        $region41: #{tpu_custom_call.1} parent=31 // pred_check
          %p670 = pneg %p122
        $region42: #{tpu_custom_call.1} parent=31 // pred_check_branch
          %672 = sbr.rel (%p670) target = $region44
        $region43: #{tpu_custom_call.1} parent=31 // pred_region
          %s673 = sld [smem:[#allocation3 + %s29]]
          %s675 = ssub.s32 768, 768
          %676 = vsyncadd %s661, %s675
          %s677 = smul.addr %s673, 6
          %s678 = smul.addr %s677, 128
          %s679 = scalar_lea.hbm %s4, %s678
          %s680 = sshll.u32 %s664, 4
          %s681 = int_to_ptr.vmem [resolvable:$true] %s680
          %686 = dma.vmem_to_hbm [thread:$0]  %s681, 768, %s679, %s661, 128, 128, 8
        $region44: #{tpu_custom_call.1} parent=31 // pred_fallthru
          _
        // Predicated region
        $region45: #{tpu_custom_call.1} parent=31 // pred_check
          %p687 = pneg %p150
        $region46: #{tpu_custom_call.1} parent=31 // pred_check_branch
          %689 = sbr.rel (%p687) target = $region48
        $region47: #{tpu_custom_call.1} parent=31 // pred_region
          %s690 = sld [smem:[#allocation3 + %s29]]
          %s692 = ssub.s32 256, 256
          %693 = vsyncadd %s666, %s692
          %s694 = smul.addr %s690, 2
          %s695 = smul.addr %s694, 128
          %s696 = scalar_lea.hbm %s5, %s695
          %s697 = sshll.u32 %s669, 4
          %s698 = int_to_ptr.vmem [resolvable:$true] %s697
          %703 = dma.vmem_to_hbm [thread:$0]  %s698, 256, %s696, %s666, 128, 128, 8
        $region48: #{tpu_custom_call.1} parent=31 // pred_fallthru
          _
      $region32: #{tpu_custom_call.1} parent=5 // pred_fallthru
        _
      %p704 = scmp.le.s32.totalorder 2, %s24
      // Predicated region
      $region49: #{tpu_custom_call.1} parent=5 // pred_check
        %p705 = pneg %p704
      $region50: #{tpu_custom_call.1} parent=5 // pred_check_branch
        %707 = sbr.rel (%p705) target = $region52
      $region51: #{tpu_custom_call.1} parent=5 // pred_region
        %s708 = ssub.s32 %s24, 2
        // Predicated region
        $region53: #{tpu_custom_call.1} parent=51 // pred_check
          %p709 = pneg %p128
        $region54: #{tpu_custom_call.1} parent=51 // pred_check_branch
          %711 = sbr.rel (%p709) target = $region56
        $region55: #{tpu_custom_call.1} parent=51 // pred_region
          %s712 = sand.u32 %s113, 1
          %s713 = scalar_lea.sflag [#allocation5], %s712
          %s714 = sand.u32 %s113, 1
          %s715 = smul.addr %s714, 48
          %s716 = scalar_lea.vmem [#allocation4], %s715
          %717 = dma.done %s713, 768
        $region56: #{tpu_custom_call.1} parent=51 // pred_fallthru
          _
        // Predicated region
        $region57: #{tpu_custom_call.1} parent=51 // pred_check
          %p718 = pneg %p156
        $region58: #{tpu_custom_call.1} parent=51 // pred_check_branch
          %720 = sbr.rel (%p718) target = $region60
        $region59: #{tpu_custom_call.1} parent=51 // pred_region
          %s721 = sand.u32 %s141, 1
          %s722 = scalar_lea.sflag [#allocation7], %s721
          %s723 = sand.u32 %s141, 1
          %s724 = smul.addr %s723, 16
          %s725 = scalar_lea.vmem [#allocation6], %s724
          %726 = dma.done %s722, 256
        $region60: #{tpu_custom_call.1} parent=51 // pred_fallthru
          _
      $region52: #{tpu_custom_call.1} parent=5 // pred_fallthru
        _
    $region6: #{tpu_custom_call.1} parent=1 // loop_footer
      %s28 = sadd.s32 1, %s24
    $region7: #{tpu_custom_call.1} parent=1 // loop_footer_branch
      %23 = sbr.rel target = $region3
    $region8: #{tpu_custom_call.1} parent=1 // loop_exit
      _
    %727 = vsyncpa [#allocation5], 1
    %s728 = scalar_lea.sflag [#allocation5], 1
    %729 = vsyncpa %s728, 1
    %730 = vsyncpa [#allocation7], 1
    %s731 = scalar_lea.sflag [#allocation7], 1
    %732 = vsyncpa %s731, 1

</llo_original>
